<compile_context>
chip_gen: v6e
topology: v6e:2x2x1
jax: 0.10.0
libtpu: 0.0.40
codegen_flags: <defaults>
</compile_context>

<pallas_src>
import functools

import jax
import jax.numpy as jnp
from jax.experimental import pallas as pl
from jax.experimental.pallas import tpu as pltpu


# ----------------------------------------------------------------------------
# Buffer construction — deterministic, mirrors Rotary.__init__.
# ----------------------------------------------------------------------------
def make_rotary_buffers(dim: int, max_seq_len: int = 64):
    assert dim % 4 == 0, "Rotary requires head dim divisible by 4"
    af = (1.0 / 1024.0) ** jnp.linspace(0.0, 1.0, num=dim // 4, dtype=jnp.float32)
    angular_freq = jnp.concatenate([af, jnp.zeros(dim // 4, dtype=jnp.float32)])
    t = jnp.arange(max_seq_len, dtype=jnp.float32)
    theta = jnp.einsum("i,j->ij", t, angular_freq)          # (max_seq_len, dim//2)
    return jnp.cos(theta), jnp.sin(theta)


# ----------------------------------------------------------------------------
# Compact per-call tables: (T, D) only — no head tiling in HBM.
# ----------------------------------------------------------------------------
def _build_compact_tables(cos_half, sin_half, T):
    cos = cos_half[:T].astype(jnp.float32)                  # (T, D/2)
    sin = sin_half[:T].astype(jnp.float32)                  # (T, D/2)
    cos_d = jnp.concatenate([cos, cos], axis=-1)             # (T, D)
    sin_s = jnp.concatenate([sin, -sin], axis=-1)            # (T, D)  sign-folded
    return cos_d, sin_s


def _largest_divisor_tile(n: int, cap: int, mult: int):
    """Largest divisor of n that is <= cap and a multiple of `mult` (or None)."""
    cap = min(n, cap)
    start = cap - (cap % mult)
    for r in range(start, 0, -mult):
        if n % r == 0:
            return r
    return None


def _vmem_capacity_bytes() -> int:
    try:
        return int(pltpu.get_tpu_info().vmem_capacity_bytes)
    except Exception:
        return 64 * 1024 * 1024                              # conservative (v7x-sized)


# ----------------------------------------------------------------------------
# Kernel: one lane-dense (Bb, R, H*D) slab per grid step.
# ----------------------------------------------------------------------------
def _rotary_kernel(x_ref, cos_ref, sin_ref, o_ref, *, head_dim: int, num_heads: int):
    half = head_dim // 2
    hd = num_heads * head_dim

    x = x_ref[...].astype(jnp.float32)                       # (Bb, R, H*D)

    # Replicate the compact (R, D) tables across heads on the lane axis.
    cos = cos_ref[...].astype(jnp.float32)                   # (R, D)
    sin = sin_ref[...].astype(jnp.float32)                   # (R, D), sign-folded
    if num_heads > 1:
        cos = jnp.concatenate([cos] * num_heads, axis=-1)     # (R, H*D)
        sin = jnp.concatenate([sin] * num_heads, axis=-1)
    cos = cos[None]                                           # (1, R, H*D) -> bcast over Bb
    sin = sin[None]

    # Within-head rotate-half partner:
    #   lanes with d = (l mod D) <  D/2 need x[..., l + D/2]
    #   lanes with d = (l mod D) >= D/2 need x[..., l - D/2]
    # Two static full-row lane rotations + a lane-position select; cross-head
    # wrapped lanes are never selected, so no zero-masked tables are needed.
    x_fwd = jnp.concatenate([x[..., half:], x[..., :half]], axis=-1)            # x[(l+half) % HD]
    x_bwd = jnp.concatenate([x[..., hd - half:], x[..., :hd - half]], axis=-1)  # x[(l-half) % HD]

    lane = jax.lax.broadcasted_iota(jnp.int32, x.shape, x.ndim - 1)
    if (head_dim & (head_dim - 1)) == 0:                      # power-of-two fast path
        d_in_head = lane & (head_dim - 1)
    else:
        d_in_head = lane % head_dim
    partner = jnp.where(d_in_head < half, x_fwd, x_bwd)

    o_ref[...] = (x * cos + partner * sin).astype(o_ref.dtype)


# ----------------------------------------------------------------------------
# Wrapper: tiling, specs, pallas_call.
# ----------------------------------------------------------------------------
def rotary_forward(x_BTHD, cos_half, sin_half, *, seq_tile=None, donate_x: bool = False):
    """Apply rotary embedding.  x_BTHD: (B, T, H, D); cos/sin: (>=T, D//2).

    If donate_x=True the output aliases the input buffer (only use when the
    caller is done with x, e.g. under jit with donate_argnums).
    """
    B, T, H, D = x_BTHD.shape
    assert D % 2 == 0, "head dim must be even"
    assert cos_half.shape[0] >= T and cos_half.shape[-1] == D // 2
    HD = H * D

    cos_d, sin_s = _build_compact_tables(cos_half, sin_half, T)

    # ---- generation-aware, byte-based tile sizing -------------------------
    vmem_cap = _vmem_capacity_bytes()
    itemsize = x_BTHD.dtype.itemsize
    # ~1-2 MiB x blocks already sit near the HBM roofline; leave room for the
    # fp32 elementwise temporaries + double-buffered in/out blocks.
    target_block_bytes = max(1 << 20, min(2 << 20, vmem_cap // 48))
    rows_budget = max(8, target_block_bytes // (HD * itemsize))

    if seq_tile is None:
        R = _largest_divisor_tile(T, rows_budget, 8)
        if R is None:
            # No multiple-of-8 divisor: use the full dim if it fits the budget,
            # otherwise a multiple-of-8 tile with a masked partial last block.
            R = T if T <= rows_budget else (rows_budget // 8) * 8
    else:
        R = seq_tile

    # If a whole sequence fits in one block, also block the batch axis so the
    # per-step DMA stays large (byte-based cap, Bb divides B).
    Bb = 1
    if R == T and B > 1:
        max_bb = max(1, rows_budget // max(T, 1))
        for cand in range(min(B, max_bb), 0, -1):
            if B % cand == 0:
                Bb = cand
                break

    grid = (pl.cdiv(T, R), pl.cdiv(B, Bb))                    # batch innermost

    x_fold = x_BTHD.reshape(B, T, HD)                         # trailing-dim merge (no copy)
    kernel = functools.partial(_rotary_kernel, head_dim=D, num_heads=H)

    out = pl.pallas_call(
        kernel,
        out_shape=jax.ShapeDtypeStruct((B, T, HD), x_BTHD.dtype),
        grid=grid,
        in_specs=[
            pl.BlockSpec((Bb, R, HD), lambda t, b: (b, t, 0)),   # x slab
            pl.BlockSpec((R, D), lambda t, b: (t, 0)),           # compact cos (resident over b)
            pl.BlockSpec((R, D), lambda t, b: (t, 0)),           # compact signed sin
        ],
        out_specs=pl.BlockSpec((Bb, R, HD), lambda t, b: (b, t, 0)),
        input_output_aliases={0: 0} if donate_x else {},
        compiler_params=pltpu.CompilerParams(
            dimension_semantics=("parallel", "parallel"),         # feed both v7x cores
            vmem_limit_bytes=int(min(5 * vmem_cap // 8, 80 * 1024 * 1024)),
        ),
    )(x_fold, cos_d, sin_s)

    return out.reshape(B, T, H, D)


# ----------------------------------------------------------------------------
# Pure-JAX reference (mirrors the PyTorch forward exactly).
# ----------------------------------------------------------------------------
def rotary_reference(x_BTHD, cos_full, sin_full):
    T = x_BTHD.shape[-3]
    cos = cos_full[None, :T, None, :]
    sin = sin_full[None, :T, None, :]
    xf = x_BTHD.astype(jnp.float32)
    half = xf.shape[-1] // 2
    x1, x2 = xf[..., :half], xf[..., half:]
    y1 = x1 * cos + x2 * sin
    y2 = x1 * (-sin) + x2 * cos
    return jnp.concatenate([y1, y2], axis=-1).astype(x_BTHD.dtype)


if __name__ == "__main__":
    # Small shapes consistent with the forward: (B, T, H, D); H*D = 128 so the
    # folded lane axis is exactly one vreg wide (lane-dense stores).
    B, T, H, D = 2, 8, 4, 32
    max_seq_len = 64  # small synthetic stand-in for 65536

    cos_full, sin_full = make_rotary_buffers(D, max_seq_len)

    key = jax.random.PRNGKey(0)
    x = jax.random.normal(key, (B, T, H, D), dtype=jnp.float32).astype(jnp.bfloat16)

    ref = rotary_reference(x, cos_full, sin_full)             # computed before the kernel
    out = jax.block_until_ready(rotary_forward(x, cos_full, sin_full))

    assert out.shape == ref.shape and out.dtype == ref.dtype
    assert jnp.allclose(out.astype(jnp.float32), ref.astype(jnp.float32),
                        atol=1e-2, rtol=1e-2)

    print("KERNEL_OK")
</pallas_src>

<mosaic_0001>
module attributes {stable_mosaic.version = 11 : i64} {
  func.func @_rotary_kernel(%arg0: i32, %arg1: i32, %arg2: memref<2x8x128xbf16, #tpu.memory_space<vmem>>, %arg3: memref<8x32xf32, #tpu.memory_space<vmem>>, %arg4: memref<8x32xf32, #tpu.memory_space<vmem>>, %arg5: memref<2x8x128xbf16, #tpu.memory_space<vmem>>) attributes {dimension_semantics = [#tpu.dimension_semantics<parallel>, #tpu.dimension_semantics<parallel>], iteration_bounds = array<i64: 1, 1>, scalar_prefetch = 0 : i64, scratch_operands = 0 : i64, tpu.core_type = #tpu.core_type<tc>, window_params = [{transform_indices = @transform_0, window_bounds = array<i64: 2, 8, 128>}, {transform_indices = @transform_1, window_bounds = array<i64: 8, 32>}, {transform_indices = @transform_2, window_bounds = array<i64: 8, 32>}, {transform_indices = @transform_3, window_bounds = array<i64: 2, 8, 128>}]} {
    %c0 = arith.constant 0 : index
    %c0_0 = arith.constant 0 : index
    %c0_1 = arith.constant 0 : index
    %0 = vector.load %arg2[%c0, %c0_0, %c0_1] : memref<2x8x128xbf16, #tpu.memory_space<vmem>>, vector<2x8x128xbf16>
    %1 = arith.extf %0 : vector<2x8x128xbf16> to vector<2x8x128xf32>
    %c0_2 = arith.constant 0 : index
    %c0_3 = arith.constant 0 : index
    %2 = vector.load %arg3[%c0_2, %c0_3] : memref<8x32xf32, #tpu.memory_space<vmem>>, vector<8x32xf32>
    %c0_4 = arith.constant 0 : index
    %c0_5 = arith.constant 0 : index
    %3 = vector.load %arg4[%c0_4, %c0_5] : memref<8x32xf32, #tpu.memory_space<vmem>>, vector<8x32xf32>
    %4 = tpu.concatenate %2, %2, %2, %2 in 1 : vector<8x32xf32>, vector<8x32xf32>, vector<8x32xf32>, vector<8x32xf32> -> vector<8x128xf32>
    %5 = tpu.concatenate %3, %3, %3, %3 in 1 : vector<8x32xf32>, vector<8x32xf32>, vector<8x32xf32>, vector<8x32xf32> -> vector<8x128xf32>
    %6 = vector.shape_cast %4 : vector<8x128xf32> to vector<1x8x128xf32>
    %7 = vector.shape_cast %5 : vector<8x128xf32> to vector<1x8x128xf32>
    %8 = vector.extract_strided_slice %1 {offsets = [0, 0, 16], sizes = [2, 8, 112], strides = [1, 1, 1]} : vector<2x8x128xf32> to vector<2x8x112xf32>
    %9 = vector.extract_strided_slice %1 {offsets = [0, 0, 0], sizes = [2, 8, 16], strides = [1, 1, 1]} : vector<2x8x128xf32> to vector<2x8x16xf32>
    %10 = tpu.concatenate %8, %9 in 2 : vector<2x8x112xf32>, vector<2x8x16xf32> -> vector<2x8x128xf32>
    %11 = vector.extract_strided_slice %1 {offsets = [0, 0, 112], sizes = [2, 8, 16], strides = [1, 1, 1]} : vector<2x8x128xf32> to vector<2x8x16xf32>
    %12 = vector.extract_strided_slice %1 {offsets = [0, 0, 0], sizes = [2, 8, 112], strides = [1, 1, 1]} : vector<2x8x128xf32> to vector<2x8x112xf32>
    %13 = tpu.concatenate %11, %12 in 2 : vector<2x8x16xf32>, vector<2x8x112xf32> -> vector<2x8x128xf32>
    %14 = tpu.iota {dimensions = array<i32: 2>} : vector<2x8x128xi32>
    %c31_i32 = arith.constant 31 : i32
    %15 = vector.broadcast %c31_i32 : i32 to vector<2x8x128xi32>
    %16 = arith.andi %14, %15 : vector<2x8x128xi32>
    %c16_i32 = arith.constant 16 : i32
    %17 = vector.broadcast %c16_i32 : i32 to vector<2x8x128xi32>
    %18 = arith.cmpi slt, %16, %17 : vector<2x8x128xi32>
    %19 = arith.select %18, %10, %13 : vector<2x8x128xi1>, vector<2x8x128xf32>
    %20 = vector.broadcast %6 : vector<1x8x128xf32> to vector<2x8x128xf32>
    %21 = arith.mulf %1, %20 : vector<2x8x128xf32>
    %22 = vector.broadcast %7 : vector<1x8x128xf32> to vector<2x8x128xf32>
    %23 = arith.mulf %19, %22 : vector<2x8x128xf32>
    %24 = arith.addf %21, %23 : vector<2x8x128xf32>
    %25 = arith.truncf %24 : vector<2x8x128xf32> to vector<2x8x128xbf16>
    %c0_6 = arith.constant 0 : index
    %c0_7 = arith.constant 0 : index
    %c0_8 = arith.constant 0 : index
    %26 = vector.load %arg5[%c0_6, %c0_7, %c0_8] : memref<2x8x128xbf16, #tpu.memory_space<vmem>>, vector<2x8x128xbf16>
    tpu.vector_store %arg5[%c0_6, %c0_7, %c0_8], %25 {strides = array<i32>} : memref<2x8x128xbf16, #tpu.memory_space<vmem>>, vector<2x8x128xbf16>,
    return
  }
  func.func @transform_0(%arg0: i32, %arg1: i32) -> (i32, i32, i32) {
    %c0_i32 = arith.constant 0 : i32
    %c0_i32_0 = arith.constant 0 : i32
    return %arg1, %arg0, %c0_i32 : i32, i32, i32
  }
  func.func @transform_1(%arg0: i32, %arg1: i32) -> (i32, i32) {
    %c0_i32 = arith.constant 0 : i32
    %c0_i32_0 = arith.constant 0 : i32
    return %arg0, %c0_i32 : i32, i32
  }
  func.func @transform_2(%arg0: i32, %arg1: i32) -> (i32, i32) {
    %c0_i32 = arith.constant 0 : i32
    %c0_i32_0 = arith.constant 0 : i32
    return %arg0, %c0_i32 : i32, i32
  }
  func.func @transform_3(%arg0: i32, %arg1: i32) -> (i32, i32, i32) {
    %c0_i32 = arith.constant 0 : i32
    %c0_i32_0 = arith.constant 0 : i32
    return %arg1, %arg0, %c0_i32 : i32, i32, i32
  }
}

</mosaic_0001>

<llo_original>
// kernel: tpu_custom_call.1
$region0: #{tpu_custom_call.1}
  #allocation0 [shape = 'u32[]', space=smem, size = 0x4, offset = 0x4, fixed_abs, tag = 'smem constant byte address 0x4 - core index']
  #allocation1 [shape = 'u32[144,128]{1,0:T(1,128)}', space=vmem, size = 0x12000, scoped, tag = 'internal scratch']
  %s0 = inlined_call_operand.hbm [shape: bf16[2,8,128], index: 0, kind: input, shape index: {}]
  %s1 = inlined_call_operand.hbm [shape: f32[8,32], index: 1, kind: input, shape index: {}]
  %s2 = inlined_call_operand.hbm [shape: f32[8,32], index: 2, kind: input, shape index: {}]
  %s3 = inlined_call_operand.hbm [shape: bf16[2,8,128], index: 3, kind: output, shape index: {}]
  %s4 = sld [smem:[#allocation0]]
  $region34: #{tpu_custom_call.1} parent=0
    _
  %s6 = ssub.s32 1, %s4
  %s7 = scalar_select 0, %s6, %s4
  $region1: #{tpu_custom_call.1} parent=0
    #allocation2 [shape = 'u8[4096]{0}', space=vmem, size = 0x1000, scoped, tag = 'input window, operand 0, single buffered']
    #allocation3 [shape = 's32[1]{0}', space=sflag, size = 0x4, scoped, tag = 'scoped memory for tpu_custom_call.1']
    #allocation4 [shape = 's32[1]{0}', space=sflag, size = 0x4, scoped, tag = 'scoped memory for tpu_custom_call.1']
    #allocation5 [shape = 'u8[4096]{0}', space=vmem, size = 0x1000, scoped, tag = 'input window, operand 1, single buffered']
    #allocation6 [shape = 's32[1]{0}', space=sflag, size = 0x4, scoped, tag = 'scoped memory for tpu_custom_call.1']
    #allocation7 [shape = 'u8[4096]{0}', space=vmem, size = 0x1000, scoped, tag = 'input window, operand 2, single buffered']
    #allocation8 [shape = 'u8[4096]{0}', space=vmem, size = 0x1000, scoped, tag = 'output window, operand 0, single buffered']
    %8 = vsyncpa [#allocation3], 0
    %9 = vsyncpa [#allocation6], 0
    %10 = vsyncpa [#allocation4], 0
    // Predicated region
    $region2: #{tpu_custom_call.1} parent=1 // pred_check
      _
    $region3: #{tpu_custom_call.1} parent=1 // pred_check_branch
      %12 = sbr.rel (0) target = $region5
    $region4: #{tpu_custom_call.1} parent=1 // pred_region
      %s14 = ssub.s32 128, 128
      %15 = vsyncadd [#allocation3], %s14
      %s16 = sshll.u32 [#allocation2], 4
      %s17 = int_to_ptr.vmem [resolvable:$true] %s16
      %22 = dma.hbm_to_vmem [thread:$0]  %s0, 128, %s17, [#allocation3], 64, 64, 4
    $region5: #{tpu_custom_call.1} parent=1 // pred_fallthru
      _
    // Predicated region
    $region6: #{tpu_custom_call.1} parent=1 // pred_check
      _
    $region7: #{tpu_custom_call.1} parent=1 // pred_check_branch
      %24 = sbr.rel (0) target = $region9
    $region8: #{tpu_custom_call.1} parent=1 // pred_region
      %s26 = ssub.s32 128, 128
      %27 = vsyncadd [#allocation6], %s26
      %s29 = sshll.u32 [#allocation5], 4
      %s30 = int_to_ptr.vmem [resolvable:$true] %s29
      %32 = dma.hbm_to_vmem [thread:$0]  %s1, 128, %s30, [#allocation6]
    $region9: #{tpu_custom_call.1} parent=1 // pred_fallthru
      _
    // Predicated region
    $region10: #{tpu_custom_call.1} parent=1 // pred_check
      _
    $region11: #{tpu_custom_call.1} parent=1 // pred_check_branch
      %34 = sbr.rel (0) target = $region13
    $region12: #{tpu_custom_call.1} parent=1 // pred_region
      %s36 = ssub.s32 128, 128
      %37 = vsyncadd [#allocation6], %s36
      %s39 = sshll.u32 [#allocation7], 4
      %s40 = int_to_ptr.vmem [resolvable:$true] %s39
      %42 = dma.hbm_to_vmem [thread:$0]  %s2, 128, %s40, [#allocation6]
    $region13: #{tpu_custom_call.1} parent=1 // pred_fallthru
      _
    // Predicated region
    $region14: #{tpu_custom_call.1} parent=1 // pred_check
      _
    $region15: #{tpu_custom_call.1} parent=1 // pred_check_branch
      %44 = sbr.rel (0) target = $region17
    $region16: #{tpu_custom_call.1} parent=1 // pred_region
      %45 = dma.done [#allocation3], 128
    $region17: #{tpu_custom_call.1} parent=1 // pred_fallthru
      _
    // Predicated region
    $region18: #{tpu_custom_call.1} parent=1 // pred_check
      _
    $region19: #{tpu_custom_call.1} parent=1 // pred_check_branch
      %47 = sbr.rel (0) target = $region21
    $region20: #{tpu_custom_call.1} parent=1 // pred_region
      %48 = dma.done [#allocation6], 128
    $region21: #{tpu_custom_call.1} parent=1 // pred_fallthru
      _
    // Predicated region
    $region22: #{tpu_custom_call.1} parent=1 // pred_check
      _
    $region23: #{tpu_custom_call.1} parent=1 // pred_check_branch
      %50 = sbr.rel (0) target = $region25
    $region24: #{tpu_custom_call.1} parent=1 // pred_region
      %51 = dma.done [#allocation6], 128
    $region25: #{tpu_custom_call.1} parent=1 // pred_fallthru
      _
    %v52 = vld [vmem:[#allocation2] sm:$0xf]
    %v53 = vld [vmem:[#allocation2 + $0x4] sm:$0xf]
    %v54 = vunpack.c.l.bf16 %v52
    %v55 = vunpack.c.l.bf16 %v53
    %v56 = vld [vmem:[#allocation5] sm:$0xff]
    %v57 = vld [vmem:[#allocation7] sm:$0xff]
    %59 = vrot.lane.b32.xlu0 %v56, 32
    %v60 = vpop.permute.xlu0 %59
    %62 = vrot.lane.b32.xlu0 %v56, 64
    %v63 = vpop.permute.xlu0 %62
    %65 = vrot.lane.b32.xlu0 %v56, 96
    %v66 = vpop.permute.xlu0 %65
    %vm68 = vcmask 261120
    %v69 = vsel %vm68, %v56, %v60
    %vm70 = vcmask 523264
    %v71 = vsel %vm70, %v69, %v63
    %vm72 = vcmask 785408
    %v73 = vsel %vm72, %v71, %v66
    %75 = vrot.lane.b32.xlu0 %v57, 32
    %v76 = vpop.permute.xlu0 %75
    %78 = vrot.lane.b32.xlu0 %v57, 64
    %v79 = vpop.permute.xlu0 %78
    %81 = vrot.lane.b32.xlu0 %v57, 96
    %v82 = vpop.permute.xlu0 %81
    %v84 = vsel %vm68, %v57, %v76
    %v85 = vsel %vm70, %v84, %v79
    %v86 = vsel %vm72, %v85, %v82
    %89 = vrot.lane.b32.xlu0 %v54, 112
    %v90 = vpop.permute.xlu0 %89
    %91 = vrot.lane.b32.xlu0 %v55, 112
    %v92 = vpop.permute.xlu0 %91
    %95 = vrot.lane.b32.xlu0 %v54, 16
    %v96 = vpop.permute.xlu0 %95
    %97 = vrot.lane.b32.xlu0 %v55, 16
    %v98 = vpop.permute.xlu0 %97
    %v101 = vlaneseq
    %v102 = vand.u32 %v101, 127
    %v103 = vand.u32 %v102, 31
    %vm104 = vcmp.lt.s32.totalorder %v103, 16
    %v105 = vsel %vm104, %v90, %v96
    %v106 = vsel %vm104, %v92, %v98
    %v107 = vmul.f32 %v54, %v73
    %v108 = vmul.f32 %v55, %v73
    %v109 = vmul.f32 %v105, %v86
    %v110 = vmul.f32 %v106, %v86
    %v111 = vadd.f32 %v107, %v109
    %v112 = vadd.f32 %v108, %v110
    %v113 = vpack.c.bf16 %v111, %v111
    %v114 = vpack.c.bf16 %v112, %v112
    %115 = vst [vmem:[#allocation8] sm:$0xf] %v113
    %116 = vst [vmem:[#allocation8 + $0x4] sm:$0xf] %v114
    // Predicated region
    $region26: #{tpu_custom_call.1} parent=1 // pred_check
      _
    $region27: #{tpu_custom_call.1} parent=1 // pred_check_branch
      %118 = sbr.rel (0) target = $region29
    $region28: #{tpu_custom_call.1} parent=1 // pred_region
      %s120 = ssub.s32 128, 128
      %121 = vsyncadd [#allocation4], %s120
      %s122 = sshll.u32 [#allocation8], 4
      %s123 = int_to_ptr.vmem [resolvable:$true] %s122
      %128 = dma.vmem_to_hbm [thread:$0]  %s123, 128, %s3, [#allocation4], 64, 64, 4
    $region29: #{tpu_custom_call.1} parent=1 // pred_fallthru
      _
    // Predicated region
    $region30: #{tpu_custom_call.1} parent=1 // pred_check
      _
    $region31: #{tpu_custom_call.1} parent=1 // pred_check_branch
      %130 = sbr.rel (0) target = $region33
    $region32: #{tpu_custom_call.1} parent=1 // pred_region
      %131 = dma.done [#allocation4], 128
    $region33: #{tpu_custom_call.1} parent=1 // pred_fallthru
      _
    %132 = vsyncpa [#allocation3], 1
    %133 = vsyncpa [#allocation6], 1
    %134 = vsyncpa [#allocation4], 1

</llo_original>
